<compile_context>
chip_gen: v7x
topology: tpu7x:2x2x1
jax: 0.10.0
libtpu: 0.0.40
codegen_flags: <defaults>
</compile_context>

<pallas_src>
import functools

import jax
import jax.numpy as jnp
from jax import lax
from jax.experimental import pallas as pl
from jax.experimental.pallas import tpu as pltpu

FILTER_SIZE = 512  # AffineCoupling default filter_size


# ----------------------------------------------------------------------------
# Kernel 1: ActNorm data-dependent init statistics (per-block partials)
# ----------------------------------------------------------------------------
def _actnorm_stats_kernel(x_ref, sum_ref, ssq_ref):
    x = x_ref[0]                                    # (C, N)  channels in sublanes
    sum_ref[0] = jnp.sum(x, axis=1, keepdims=True)  # (C, 1) per-block partial
    ssq_ref[0] = jnp.sum(x * x, axis=1, keepdims=True)


# ----------------------------------------------------------------------------
# Kernel 2: fused (ActNorm+InvConv2dLU) + AffineCoupling (per packed batch tile)
# ----------------------------------------------------------------------------
def _flow_apply_kernel(x_ref, wp_ref, bp_ref, mask_ref, w1_ref, b1_ref,
                       w2_ref, b2_ref, w3_ref, cb_ref, e3_ref,
                       out_ref, ld_ref, patches_ref,
                       *, C, C2, G1, G3, offsets):
    N = x_ref.shape[2]
    x = x_ref[0]                                             # (C, N), pixels in lanes
    masks = mask_ref[...]                                    # (9, N)

    # ---- ActNorm folded into the 1x1 invertible conv: y = W' @ x + b'.
    # C is tiny, so keep it exact f32 on the VPU instead of an MXU call. ----------
    wp = wp_ref[...]                                         # (C, C)
    y = wp[:, 0:1] * x[0:1, :] + bp_ref[...]
    for i in range(1, C):
        y = y + wp[:, i:i + 1] * x[i:i + 1, :]
    in_a = y[:C2, :]                                         # (C2, N)
    in_b = y[C2:, :]

    # ---- coupling net conv1: 3x3, zero pad=1.  Build 8-aligned tap groups in a VMEM
    # scratch via XLU lane rolls + masks, then one (F, 9*G1)@(9*G1, N) matmul. -------
    patches_ref[...] = jnp.zeros_like(patches_ref)           # keep pad rows zero
    for t, off in enumerate(offsets):
        tap = in_a if off == 0 else pltpu.roll(in_a, shift=(-off) % N, axis=1)
        patches_ref[t * G1: t * G1 + C2, :] = tap * masks[t:t + 1, :]
    h1 = jnp.dot(w1_ref[...], patches_ref[...].astype(jnp.bfloat16),
                 preferred_element_type=jnp.float32) + b1_ref[...]
    h1 = jnp.maximum(h1, 0.0)                                # (F, N) f32

    # ---- conv2: 1x1 conv, the dominant (F,F)@(F,N) matmul (bf16 operands) ----------
    h2 = jnp.dot(w2_ref[...], h1.astype(jnp.bfloat16),
                 preferred_element_type=jnp.float32) + b2_ref[...]
    h2 = jnp.maximum(h2, 0.0)                                # (F, N) f32

    # ---- ZeroConv2d: single fused (9*G3, F)@(F, N) matmul, then per-tap roll+mask+acc.
    # Constant pad-with-1 border + conv bias is precomputed (cb_ref). -----------------
    u = jnp.dot(w3_ref[...], h2.astype(jnp.bfloat16),
                preferred_element_type=jnp.float32)          # (9*G3, N)
    acc = cb_ref[...]                                        # (C, N)
    for t, off in enumerate(offsets):
        ut = u[t * G3: t * G3 + C, :]
        if off != 0:
            ut = pltpu.roll(ut, shift=(-off) % N, axis=1)
        acc = acc + ut * masks[t:t + 1, :]
    out3 = acc * e3_ref[...]                                 # * exp(3 * zero_scale)

    # ---- affine coupling -------------------------------------------------------------
    log_s = out3[:C2, :]
    t_shift = out3[C2:, :]
    s = jax.nn.sigmoid(log_s + 2.0)
    out_b = (in_b + t_shift) * s

    out_ref[0, :C2, :] = in_a                                # direct writes, no concat
    out_ref[0, C2:, :] = out_b
    ld_ref[0] = jnp.sum(jnp.log(s), axis=0, keepdims=True)   # per-pixel log-det partials


# ----------------------------------------------------------------------------
# Wrapper (layout glue only: reshapes, parameter re-orderings, tiny scalar math)
# ----------------------------------------------------------------------------
def flow_forward(x, params):
    B, C, H, W = x.shape
    assert C % 2 == 0
    C2 = C // 2
    F = params["w2"].shape[0]
    HW = H * W
    n = B * HW

    # Pack B_tile images into the lane axis so the MXU N dimension is >= ~512.
    B_tile = 1
    for bt in range(B, 0, -1):
        if B % bt == 0 and bt * HW <= 2048:
            B_tile = bt
            break
    nb = B // B_tile
    Nb = B_tile * HW
    xp = jnp.transpose(x.reshape(nb, B_tile, C, HW), (0, 2, 1, 3)).reshape(nb, C, Nb)

    # --- Kernel 1: ActNorm statistics (per-block partials, grid "parallel") ---------
    sum_p, ssq_p = pl.pallas_call(
        _actnorm_stats_kernel,
        grid=(nb,),
        in_specs=[pl.BlockSpec((1, C, Nb), lambda g: (g, 0, 0))],
        out_specs=(pl.BlockSpec((1, C, 1), lambda g: (g, 0, 0)),
                   pl.BlockSpec((1, C, 1), lambda g: (g, 0, 0))),
        out_shape=(jax.ShapeDtypeStruct((nb, C, 1), jnp.float32),
                   jax.ShapeDtypeStruct((nb, C, 1), jnp.float32)),
        compiler_params=pltpu.CompilerParams(dimension_semantics=("parallel",)),
    )(xp)

    tot = jnp.sum(sum_p, axis=(0, 2))                        # (C,)
    tot2 = jnp.sum(ssq_p, axis=(0, 2))
    mean = tot / n
    # NOTE: single-pass variance (cancellation-prone if |mean| >> std); matches the
    # previous version and is fine for roughly-normalized flow inputs.
    var = (tot2 - n * mean * mean) / (n - 1)                 # unbiased (torch.std)
    std = jnp.sqrt(jnp.maximum(var, 0.0))
    loc = -mean
    scale = 1.0 / (std + 1e-6)
    ld_act = HW * jnp.sum(jnp.log(jnp.abs(scale)))

    # Fold ActNorm into the invertible 1x1 conv:  W@(scale*(x+loc)) = W'x + b'
    Wc = params["invconv_weight"]                            # (C, C)
    wprime = Wc * scale[None, :]
    bprime = (Wc @ (scale * loc))[:, None]                   # (C, 1)

    # --- spatial tap masks over the packed lane axis (zero pad / image boundaries) ---
    jj = jnp.arange(Nb)
    pix = jj % HW
    py, px = pix // W, pix % W
    offs, mrows = [], []
    for t in range(9):
        dy, dx = t // 3 - 1, t % 3 - 1
        offs.append(dy * W + dx)
        mrows.append((py + dy >= 0) & (py + dy < H) & (px + dx >= 0) & (px + dx < W))
    masks = jnp.stack(mrows, axis=0).astype(jnp.float32)     # (9, Nb)

    # ZeroConv2d constant border (pad value = 1) contribution + conv bias, precomputed
    S3 = jnp.sum(params["w3"], axis=1).reshape(C, 9)                       # sum over F
    cbias = jnp.einsum("ct,tn->cn", S3, 1.0 - masks) + params["b3"][:, None]  # (C, Nb)
    exp3 = jnp.exp(params["zero_scale"] * 3.0)[:, None]      # (C, 1)

    # matmul-friendly, 8-sublane-aligned, bf16 weight layouts
    G1 = ((C2 + 7) // 8) * 8
    G3 = ((C + 7) // 8) * 8
    w1_taps = jnp.transpose(params["w1"], (2, 3, 0, 1)).reshape(9, F, C2)  # per tap (F,C2)
    w1_all = jnp.zeros((9, F, G1), jnp.float32).at[:, :, :C2].set(w1_taps)
    w1_all = jnp.transpose(w1_all, (1, 0, 2)).reshape(F, 9 * G1).astype(jnp.bfloat16)
    b1 = params["b1"][:, None]                                             # (F, 1) f32
    w2 = params["w2"].astype(jnp.bfloat16)                                 # (F, F)
    b2 = params["b2"][:, None]
    w3_taps = jnp.transpose(params["w3"], (2, 3, 0, 1)).reshape(9, C, F)   # per tap (C,F)
    w3_all = jnp.zeros((9, G3, F), jnp.float32).at[:, :C, :].set(w3_taps)
    w3_all = w3_all.reshape(9 * G3, F).astype(jnp.bfloat16)                # (9*G3, F)

    # --- Kernel 2: fused channel-mix + affine coupling, grid over packed batch tiles ---
    # TODO(synk): for large H*W additionally tile the lane axis with a W+1 halo; size the
    # tile per generation (v7x 64 MiB physical / v5e 16 MiB scoped VMEM) and cap weight
    # buffering (pl.Buffered(1)) when VMEM gets tight.
    out3d, ld_part = pl.pallas_call(
        functools.partial(_flow_apply_kernel, C=C, C2=C2, G1=G1, G3=G3,
                          offsets=tuple(offs)),
        grid=(nb,),
        in_specs=[
            pl.BlockSpec((1, C, Nb), lambda g: (g, 0, 0)),   # x (packed)
            pl.BlockSpec((C, C), lambda g: (0, 0)),          # folded actnorm+invconv W'
            pl.BlockSpec((C, 1), lambda g: (0, 0)),          # folded bias b'
            pl.BlockSpec((9, Nb), lambda g: (0, 0)),         # tap masks
            pl.BlockSpec((F, 9 * G1), lambda g: (0, 0)),     # conv1 weight (bf16)
            pl.BlockSpec((F, 1), lambda g: (0, 0)),          # conv1 bias
            pl.BlockSpec((F, F), lambda g: (0, 0)),          # conv2 weight (bf16)
            pl.BlockSpec((F, 1), lambda g: (0, 0)),          # conv2 bias
            pl.BlockSpec((9 * G3, F), lambda g: (0, 0)),     # zeroconv stacked W (bf16)
            pl.BlockSpec((C, Nb), lambda g: (0, 0)),         # zeroconv const border+bias
            pl.BlockSpec((C, 1), lambda g: (0, 0)),          # exp(3*zero_scale)
        ],
        out_specs=(
            pl.BlockSpec((1, C, Nb), lambda g: (g, 0, 0)),
            pl.BlockSpec((1, 1, Nb), lambda g: (g, 0, 0)),
        ),
        out_shape=(
            jax.ShapeDtypeStruct((nb, C, Nb), jnp.float32),
            jax.ShapeDtypeStruct((nb, 1, Nb), jnp.float32),
        ),
        scratch_shapes=[pltpu.VMEM((9 * G1, Nb), jnp.float32)],   # conv1 patches
        compiler_params=pltpu.CompilerParams(dimension_semantics=("parallel",)),
    )(xp, wprime, bprime, masks, w1_all, b1, w2, b2, w3_all, cbias, exp3)

    out = jnp.transpose(out3d.reshape(nb, C, B_tile, HW), (0, 2, 1, 3)).reshape(B, C, H, W)
    det2 = jnp.sum(ld_part.reshape(nb, B_tile, HW), axis=2).reshape(B)
    det1 = HW * params["sum_ws"]                             # InvConv2dLU log-det
    log_det = jnp.broadcast_to(ld_act + det1, (B,)) + det2
    return out, log_det


# ----------------------------------------------------------------------------
# Deterministic parameter initialization (mirrors the PyTorch __init__)
# ----------------------------------------------------------------------------
def init_params(key, C, F=FILTER_SIZE):
    k1, k2, k3 = jax.random.split(key, 3)
    C2 = C // 2

    # InvConv2dLU: random -> QR -> LU factorization
    wmat = jax.random.normal(k1, (C, C), dtype=jnp.float32)
    q, _ = jnp.linalg.qr(wmat)
    p, l, u = jax.scipy.linalg.lu(q)
    w_s = jnp.diag(u)
    w_u = jnp.triu(u, 1)
    u_mask = jnp.triu(jnp.ones((C, C), jnp.float32), 1)
    l_mask = u_mask.T
    s_sign = jnp.sign(w_s)
    w_s_log = jnp.log(jnp.abs(w_s))
    l_eye = jnp.eye(C, dtype=jnp.float32)
    weight = p @ (l * l_mask + l_eye) @ (w_u * u_mask + jnp.diag(s_sign * jnp.exp(w_s_log)))
    sum_ws = jnp.sum(w_s_log)

    # AffineCoupling.net
    w1 = 0.05 * jax.random.normal(k2, (F, C2, 3, 3), jnp.float32)   # normal_(0, 0.05)
    b1 = jnp.zeros((F,), jnp.float32)
    w2 = 0.05 * jax.random.normal(k3, (F, F), jnp.float32)          # 1x1 conv weight
    b2 = jnp.zeros((F,), jnp.float32)
    w3 = jnp.zeros((C, F, 3, 3), jnp.float32)                       # ZeroConv2d weight
    b3 = jnp.zeros((C,), jnp.float32)
    zero_scale = jnp.zeros((C,), jnp.float32)                       # ZeroConv2d scale

    return dict(invconv_weight=weight, sum_ws=sum_ws,
                w1=w1, b1=b1, w2=w2, b2=b2, w3=w3, b3=b3, zero_scale=zero_scale)


# ----------------------------------------------------------------------------
# Pure-JAX reference for validation (NCHW, same math as PyTorch)
# ----------------------------------------------------------------------------
def flow_reference(x, params):
    B, C, H, W = x.shape
    C2 = C // 2
    F = params["w2"].shape[0]
    hp = lax.Precision.HIGHEST
    dn = ("NCHW", "OIHW", "NCHW")

    flat = jnp.transpose(x, (1, 0, 2, 3)).reshape(C, -1)
    mean = flat.mean(axis=1)
    std = jnp.sqrt(jnp.sum((flat - mean[:, None]) ** 2, axis=1) / (flat.shape[1] - 1))
    loc = (-mean).reshape(1, C, 1, 1)
    scale = (1.0 / (std + 1e-6)).reshape(1, C, 1, 1)
    out = scale * (x + loc)
    ld_act = H * W * jnp.sum(jnp.log(jnp.abs(scale)))

    out = jnp.einsum("oi,bihw->bohw", params["invconv_weight"], out, precision=hp)
    det1 = H * W * params["sum_ws"]

    in_a, in_b = out[:, :C2], out[:, C2:]
    h = lax.conv_general_dilated(in_a, params["w1"], (1, 1), ((1, 1), (1, 1)),
                                 dimension_numbers=dn, precision=hp)
    h = jax.nn.relu(h + params["b1"].reshape(1, F, 1, 1))
    h = lax.conv_general_dilated(h, params["w2"].reshape(F, F, 1, 1), (1, 1), ((0, 0), (0, 0)),
                                 dimension_numbers=dn, precision=hp)
    h = jax.nn.relu(h + params["b2"].reshape(1, F, 1, 1))
    hpad = jnp.pad(h, ((0, 0), (0, 0), (1, 1), (1, 1)), constant_values=1.0)
    h3 = lax.conv_general_dilated(hpad, params["w3"], (1, 1), ((0, 0), (0, 0)),
                                  dimension_numbers=dn, precision=hp)
    h3 = (h3 + params["b3"].reshape(1, C, 1, 1)) * jnp.exp(params["zero_scale"].reshape(1, C, 1, 1) * 3.0)
    log_s, t = h3[:, :C2], h3[:, C2:]
    s = jax.nn.sigmoid(log_s + 2.0)
    out_b = (in_b + t) * s
    det2 = jnp.sum(jnp.log(s).reshape(B, -1), axis=1)
    out = jnp.concatenate([in_a, out_b], axis=1)
    return out, ld_act + det1 + det2


def _check(x, params, atol, rtol, tag):
    out, log_det = flow_forward(x, params)
    out, log_det = jax.block_until_ready((out, log_det))
    ref_out, ref_ld = flow_reference(x, params)
    assert out.shape == x.shape and log_det.shape == (x.shape[0],)
    assert jnp.allclose(out, ref_out, atol=atol, rtol=rtol), f"{tag}: output mismatch"
    assert jnp.allclose(log_det, ref_ld, atol=atol, rtol=rtol), f"{tag}: log_det mismatch"


if __name__ == "__main__":
    key = jax.random.PRNGKey(0)
    kx, kp, kz = jax.random.split(key, 3)
    B, C, H, W = 2, 4, 16, 16
    x = jax.random.normal(kx, (B, C, H, W), dtype=jnp.float32)

    # Check 1: exact PyTorch-style initialization (ZeroConv2d weights are zero).
    params = init_params(kp, C, FILTER_SIZE)
    _check(x, params, atol=2e-3, rtol=2e-3, tag="torch-init")

    # Check 2: perturb the ZeroConv2d params so that path is numerically exercised.
    # Looser tolerance: the Pallas matmuls use bf16 operands (same as default MXU
    # precision) while the reference uses Precision.HIGHEST; geometry bugs would be >>1e-1.
    z1, z2, z3 = jax.random.split(kz, 3)
    params2 = dict(params)
    params2["w3"] = 0.02 * jax.random.normal(z1, params["w3"].shape, jnp.float32)
    params2["b3"] = 0.02 * jax.random.normal(z2, params["b3"].shape, jnp.float32)
    params2["zero_scale"] = 0.02 * jax.random.normal(z3, params["zero_scale"].shape, jnp.float32)
    _check(x, params2, atol=2e-2, rtol=2e-2, tag="randomized-zeroconv")

    print("KERNEL_OK")
</pallas_src>

<mosaic_0001>
module attributes {stable_mosaic.version = 11 : i64} {
  func.func @_actnorm_stats_kernel(%arg0: i32, %arg1: memref<1x4x512xf32, #tpu.memory_space<vmem>>, %arg2: memref<1x4x1xf32, #tpu.memory_space<vmem>>, %arg3: memref<1x4x1xf32, #tpu.memory_space<vmem>>) attributes {dimension_semantics = [#tpu.dimension_semantics<parallel>], iteration_bounds = array<i64: 1>, scalar_prefetch = 0 : i64, scratch_operands = 0 : i64, tpu.core_type = #tpu.core_type<tc>, window_params = [{transform_indices = @transform_0, window_bounds = array<i64: 1, 4, 512>}, {transform_indices = @transform_1, window_bounds = array<i64: 1, 4, 1>}, {transform_indices = @transform_2, window_bounds = array<i64: 1, 4, 1>}]} {
    %c0 = arith.constant 0 : index
    %c0_0 = arith.constant 0 : index
    %c0_1 = arith.constant 0 : index
    %0 = vector.load %arg1[%c0, %c0_0, %c0_1] : memref<1x4x512xf32, #tpu.memory_space<vmem>>, vector<1x4x512xf32>
    %1 = vector.shape_cast %0 : vector<1x4x512xf32> to vector<4x512xf32>
    %cst = arith.constant dense<0.000000e+00> : vector<4xf32>
    %2 = vector.multi_reduction <add>, %1, %cst [1] : vector<4x512xf32> to vector<4xf32>
    %3 = vector.shape_cast %2 : vector<4xf32> to vector<4x1xf32>
    %c0_2 = arith.constant 0 : index
    %c0_3 = arith.constant 0 : index
    %c0_4 = arith.constant 0 : index
    %4 = vector.load %arg2[%c0_2, %c0_3, %c0_4] : memref<1x4x1xf32, #tpu.memory_space<vmem>>, vector<1x4x1xf32>
    %5 = vector.shape_cast %4 : vector<1x4x1xf32> to vector<4x1xf32>
    %6 = vector.shape_cast %3 : vector<4x1xf32> to vector<1x4x1xf32>
    tpu.vector_store %arg2[%c0_2, %c0_3, %c0_4], %6 {strides = array<i32>} : memref<1x4x1xf32, #tpu.memory_space<vmem>>, vector<1x4x1xf32>,
    %7 = arith.mulf %1, %1 : vector<4x512xf32>
    %cst_5 = arith.constant dense<0.000000e+00> : vector<4xf32>
    %8 = vector.multi_reduction <add>, %7, %cst_5 [1] : vector<4x512xf32> to vector<4xf32>
    %9 = vector.shape_cast %8 : vector<4xf32> to vector<4x1xf32>
    %c0_6 = arith.constant 0 : index
    %c0_7 = arith.constant 0 : index
    %c0_8 = arith.constant 0 : index
    %10 = vector.load %arg3[%c0_6, %c0_7, %c0_8] : memref<1x4x1xf32, #tpu.memory_space<vmem>>, vector<1x4x1xf32>
    %11 = vector.shape_cast %10 : vector<1x4x1xf32> to vector<4x1xf32>
    %12 = vector.shape_cast %9 : vector<4x1xf32> to vector<1x4x1xf32>
    tpu.vector_store %arg3[%c0_6, %c0_7, %c0_8], %12 {strides = array<i32>} : memref<1x4x1xf32, #tpu.memory_space<vmem>>, vector<1x4x1xf32>,
    return
  }
  func.func @transform_0(%arg0: i32) -> (i32, i32, i32) {
    %c0_i32 = arith.constant 0 : i32
    %c0_i32_0 = arith.constant 0 : i32
    %c0_i32_1 = arith.constant 0 : i32
    return %arg0, %c0_i32, %c0_i32_0 : i32, i32, i32
  }
  func.func @transform_1(%arg0: i32) -> (i32, i32, i32) {
    %c0_i32 = arith.constant 0 : i32
    %c0_i32_0 = arith.constant 0 : i32
    %c0_i32_1 = arith.constant 0 : i32
    return %arg0, %c0_i32, %c0_i32_0 : i32, i32, i32
  }
  func.func @transform_2(%arg0: i32) -> (i32, i32, i32) {
    %c0_i32 = arith.constant 0 : i32
    %c0_i32_0 = arith.constant 0 : i32
    %c0_i32_1 = arith.constant 0 : i32
    return %arg0, %c0_i32, %c0_i32_0 : i32, i32, i32
  }
}

</mosaic_0001>

<llo_original>
// kernel: tpu_custom_call.1
$region0: #{tpu_custom_call.1}
  #allocation0 [shape = 'u32[]', space=smem, size = 0x4, offset = 0x4, fixed_abs, tag = 'smem constant byte address 0x4 - core index']
  #allocation1 [shape = 'u32[144,128]{1,0:T(1,128)}', space=vmem, size = 0x12000, scoped, tag = 'internal scratch']
  %s0 = inlined_call_operand.hbm [shape: f32[1,4,512], index: 0, kind: input, shape index: {}]
  %s1 = inlined_call_operand.vmem [shape: f32[1,4,1], index: 1, kind: output, shape index: {0}]
  %s2 = inlined_call_operand.vmem [shape: f32[1,4,1], index: 2, kind: output, shape index: {1}]
  %3 = xla_tuple %s1, %s2
  %s4 = sld [smem:[#allocation0]]
  $region26: #{tpu_custom_call.1} parent=0
    _
  %s6 = ssub.s32 1, %s4
  %s7 = scalar_select 0, %s6, %s4
  $region1: #{tpu_custom_call.1} parent=0
    #allocation2 [shape = 'u8[8192]{0}', space=vmem, size = 0x2000, scoped, tag = 'input window, operand 0, single buffered']
    #allocation3 [shape = 's32[1]{0}', space=sflag, size = 0x4, scoped, tag = 'scoped memory for tpu_custom_call.1']
    %8 = vsyncpa [#allocation3], 0
    // Predicated region
    $region2: #{tpu_custom_call.1} parent=1 // pred_check
      _
    $region3: #{tpu_custom_call.1} parent=1 // pred_check_branch
      %10 = sbr.rel (0) target = $region5
    $region4: #{tpu_custom_call.1} parent=1 // pred_region
      %s12 = ssub.s32 256, 256
      %13 = vsyncadd [#allocation3], %s12
      %s15 = sshll.u32 [#allocation2], 4
      %s16 = int_to_ptr.vmem [resolvable:$true] %s15
      %18 = dma.hbm_to_vmem [thread:$0]  %s0, 256, %s16, [#allocation3]
    $region5: #{tpu_custom_call.1} parent=1 // pred_fallthru
      _
    // Predicated region
    $region6: #{tpu_custom_call.1} parent=1 // pred_check
      _
    $region7: #{tpu_custom_call.1} parent=1 // pred_check_branch
      %20 = sbr.rel (0) target = $region9
    $region8: #{tpu_custom_call.1} parent=1 // pred_region
      %21 = dma.done [#allocation3], 256
    $region9: #{tpu_custom_call.1} parent=1 // pred_fallthru
      _
    %v22 = vld [vmem:[#allocation2] sm:$0xff]
    %v23 = vld [vmem:[#allocation2 + $0x8] sm:$0xff]
    %v26 = vcombine.high %v22, %v22
    %v27 = vcombine.high %v23, %v23
    %vm30 = vcmask 1043456
    %v31 = vsel %vm30, %v22, 0.0
    %v32 = vsel %vm30, %v26, 0.0
    %v33 = vadd.f32 %v31, %v32
    %v34 = vsel %vm30, %v23, 0.0
    %v35 = vadd.f32 %v33, %v34
    %v36 = vsel %vm30, %v27, 0.0
    %v37 = vadd.f32 %v35, %v36
    %38 = vadd.xlane.f32.xlu0 %v37
    %v39 = vpop.xlane.xlu0 %38
    %vm40 = vcmask 3072
    %41 = vst.msk [vmem:[%s1] sm:$0xf] %vm40, %v39
    %v42 = vmul.f32 %v22, %v22
    %v43 = vmul.f32 %v23, %v23
    %v46 = vcombine.high %v42, %v42
    %v47 = vcombine.high %v43, %v43
    %v50 = vsel %vm30, %v42, 0.0
    %v51 = vsel %vm30, %v46, 0.0
    %v52 = vadd.f32 %v50, %v51
    %v53 = vsel %vm30, %v43, 0.0
    %v54 = vadd.f32 %v52, %v53
    %v55 = vsel %vm30, %v47, 0.0
    %v56 = vadd.f32 %v54, %v55
    %57 = vadd.xlane.f32.xlu0 %v56
    %v58 = vpop.xlane.xlu0 %57
    %59 = vst.msk [vmem:[%s2] sm:$0xf] %vm40, %v58
    // Predicated region
    $region10: #{tpu_custom_call.1} parent=1 // pred_check
      _
    $region11: #{tpu_custom_call.1} parent=1 // pred_check_branch
      %61 = sbr.rel (0) target = $region13
    $region12: #{tpu_custom_call.1} parent=1 // pred_region
      _
    $region13: #{tpu_custom_call.1} parent=1 // pred_fallthru
      _
    // Predicated region
    $region14: #{tpu_custom_call.1} parent=1 // pred_check
      _
    $region15: #{tpu_custom_call.1} parent=1 // pred_check_branch
      %63 = sbr.rel (0) target = $region17
    $region16: #{tpu_custom_call.1} parent=1 // pred_region
      _
    $region17: #{tpu_custom_call.1} parent=1 // pred_fallthru
      _
    // Predicated region
    $region18: #{tpu_custom_call.1} parent=1 // pred_check
      _
    $region19: #{tpu_custom_call.1} parent=1 // pred_check_branch
      %65 = sbr.rel (0) target = $region21
    $region20: #{tpu_custom_call.1} parent=1 // pred_region
      _
    $region21: #{tpu_custom_call.1} parent=1 // pred_fallthru
      _
    // Predicated region
    $region22: #{tpu_custom_call.1} parent=1 // pred_check
      _
    $region23: #{tpu_custom_call.1} parent=1 // pred_check_branch
      %67 = sbr.rel (0) target = $region25
    $region24: #{tpu_custom_call.1} parent=1 // pred_region
      _
    $region25: #{tpu_custom_call.1} parent=1 // pred_fallthru
      _
    %68 = vsyncpa [#allocation3], 1

</llo_original>
